<compile_context>
chip_gen: v6e
topology: v6e:2x2x1
jax: 0.10.0
libtpu: 0.0.40
codegen_flags: <defaults>
</compile_context>

<pallas_src>
import functools

import jax
import jax.numpy as jnp
from jax.experimental import pallas as pl
from jax.experimental.pallas import tpu as pltpu


def _meta_embedding_kernel(x_ref, w_ref, o_ref):
    # x_ref: (TB, C, TP) slab tile, channels on sublane-major axis, P on lanes
    # w_ref: (D, C)      full hallucinator1 conv weight (1x1 kernel squeezed)
    # o_ref: (TB, D, TP) softmax-over-D output, lane-dense in P
    tb = x_ref.shape[0]
    d, c = w_ref.shape
    # One fused batched matmul instead of a Python-unrolled per-slab loop:
    # broadcast the tiny (D, C) weight across the slab batch; keeps vreg
    # live-ranges flat at large tb (no spill against the 64-vreg file).
    w_b = jnp.broadcast_to(w_ref[...], (tb, d, c))                  # (TB, D, C)
    logits = jnp.einsum("bdc,bcp->bdp", w_b, x_ref[...],
                        preferred_element_type=jnp.float32)         # (TB, D, TP)
    logits = logits - jnp.max(logits, axis=1, keepdims=True)
    e = jnp.exp(logits)
    denom = jnp.sum(e, axis=1, keepdims=True)
    # Exact reciprocal: HBM-bound kernel, so the divide is free and softmax
    # rows sum to 1 exactly (no approx-reciprocal drift).
    o_ref[...] = (e * pl.reciprocal(denom)).astype(o_ref.dtype)


def _vmem_budget_bytes():
    """Generation-aware budget for the double-buffered VMEM working set.

    ~48 MiB on v7x (64 MiB physical VMEM per TC), ~96 MiB on v5e/v6e
    (128 MiB physical).  Falls back to a v7x-safe figure if the query fails.
    """
    try:
        cap = int(pltpu.get_tpu_info().vmem_capacity_bytes)
    except Exception:  # off-TPU / older runtimes
        cap = 0
    if cap <= 0:
        cap = 64 * 1024 * 1024
    return max(16 * 1024 * 1024, (cap * 3) // 4)


def _pick_tiles(B, C, D, P, itemsize, budget,
                p_target=2048, x_tile_target=8 * 1024 * 1024):
    """Choose (tile_b, tile_p).

    tile_p: full P for small spatial maps, otherwise a lane-dense multiple of
    128 so a single (C, tile_p) slab always fits VMEM.
    tile_b: grown to fill the generation-aware budget (double-buffered x + out
    + weight), soft-capped at ~8 MiB of x per grid step, and capped so the B
    grid axis keeps >= 2 steps for the v7x megacore.
    """
    tp = P if P <= p_target else (p_target // 128) * 128

    def working_set(tb, tp_):
        return 2 * tb * (C + D) * tp_ * itemsize + 2 * D * C * itemsize

    # Shrink tile_p (multiples of 128) if even a single slab would not fit.
    while tp > 128 and working_set(1, tp) > budget:
        tp = max(128, (tp // 2 // 128) * 128)

    # Keep >= 2 grid steps over B so the megacore can split the grid.
    cap_b = max(1, -(-B // 2)) if B > 1 else 1
    per_slab_ws = 2 * (C + D) * tp * itemsize
    per_slab_x = C * tp * itemsize
    max_by_budget = max(1, (budget - 2 * D * C * itemsize) // max(1, per_slab_ws))
    max_by_xtile = max(1, x_tile_target // max(1, per_slab_x))
    tb = int(max(1, min(cap_b, max_by_budget, max_by_xtile)))
    return tb, int(tp)


@functools.partial(jax.jit, static_argnames=("tb", "tp", "vmem_limit"))
def _forward(x, conv_weight, *, tb, tp, vmem_limit):
    G, N, C, H, W = x.shape
    D = conv_weight.shape[0]
    P = H * W
    B = G * N

    # Glue: merge adjacent axes only (metadata reshape, no HBM traffic).
    x3 = x.reshape(B, C, P)                         # (G*N, C, H*W)
    grid = (pl.cdiv(B, tb), pl.cdiv(P, tp))

    out3 = pl.pallas_call(
        _meta_embedding_kernel,
        out_shape=jax.ShapeDtypeStruct((B, D, P), x.dtype),
        grid_spec=pltpu.PrefetchScalarGridSpec(
            num_scalar_prefetch=0,
            grid=grid,
            in_specs=[
                pl.BlockSpec((tb, C, tp), lambda b, p: (b, 0, p)),
                pl.BlockSpec((D, C), lambda b, p: (0, 0)),   # weight reused
            ],
            out_specs=pl.BlockSpec((tb, D, tp), lambda b, p: (b, 0, p)),
        ),
        compiler_params=pltpu.CompilerParams(
            dimension_semantics=("parallel", "parallel"),
            vmem_limit_bytes=int(vmem_limit)),
    )(x3, conv_weight)

    # Glue: split adjacent axes back (metadata reshape, no transpose).
    return out3.reshape(G, N, D, H, W)


def meta_embedding_forward(x, conv_weight):
    """x: (8, N, C, H, W); conv_weight: (num_domain, C) or (num_domain, C, 1, 1).

    Returns (8, N, num_domain, H, W) = stacked version of the python list the
    PyTorch module returns (hallucinator1 applied to every group).
    """
    if conv_weight.ndim == 4:  # torch Conv2d weight (D, C, 1, 1) -> (D, C)
        conv_weight = conv_weight.reshape(conv_weight.shape[0],
                                          conv_weight.shape[1])
    G, N, C, H, W = x.shape
    D = conv_weight.shape[0]
    P = H * W
    B = G * N

    budget = _vmem_budget_bytes()
    tb, tp = _pick_tiles(B, C, D, P, x.dtype.itemsize, budget)
    return _forward(x, conv_weight, tb=tb, tp=tp, vmem_limit=int(budget))


def _reference(x, conv_weight):
    # pure-JAX reference: 1x1 conv (einsum over channels) + softmax over domain
    logits = jnp.einsum("gnchw,dc->gndhw", x, conv_weight)
    return jax.nn.softmax(logits, axis=2)


if __name__ == "__main__":
    # Small, deterministic example shapes consistent with the module:
    # 8 domain groups, batch=2, feat_dim=128, spatial 16x16, num_domain=8.
    G, N, C, H, W = 8, 2, 128, 16, 16
    num_domain = 8

    key = jax.random.PRNGKey(0)
    kx, kw = jax.random.split(key)
    x = jax.random.normal(kx, (G, N, C, H, W), dtype=jnp.float32)
    # Deterministic stand-in for Conv2d(feat_dim, num_domain, 1, bias=False)
    # weight: torch shape (num_domain, feat_dim, 1, 1).
    bound = 1.0 / (C ** 0.5)
    conv_weight = jax.random.uniform(
        kw, (num_domain, C, 1, 1), minval=-bound, maxval=bound,
        dtype=jnp.float32)

    out = meta_embedding_forward(x, conv_weight)
    out = jax.block_until_ready(out)

    ref = _reference(x, conv_weight.reshape(num_domain, C))
    assert out.shape == (G, N, num_domain, H, W)
    # Remaining tolerance covers MXU-vs-XLA matmul pass-precision differences
    # (softmax normalisation itself is now exact).
    assert jnp.allclose(out, ref, atol=2e-3, rtol=2e-3), "mismatch vs reference"

    # The PyTorch forward returns a python list of the 8 per-group outputs.
    hal_scale = [out[i] for i in range(G)]
    assert len(hal_scale) == 8 and hal_scale[0].shape == (N, num_domain, H, W)

    print("KERNEL_OK")
</pallas_src>

<mosaic_0001>
module attributes {stable_mosaic.version = 11 : i64} {
  func.func @_meta_embedding_kernel(%arg0: i32, %arg1: i32, %arg2: memref<8x128x256xf32, #tpu.memory_space<vmem>>, %arg3: memref<8x128xf32, #tpu.memory_space<vmem>>, %arg4: memref<8x8x256xf32, #tpu.memory_space<vmem>>) attributes {dimension_semantics = [#tpu.dimension_semantics<parallel>, #tpu.dimension_semantics<parallel>], iteration_bounds = array<i64: 2, 1>, scalar_prefetch = 0 : i64, scratch_operands = 0 : i64, tpu.core_type = #tpu.core_type<tc>, window_params = [{transform_indices = @transform_0, window_bounds = array<i64: 8, 128, 256>}, {pipeline_mode = #tpu.pipeline_mode<synchronous>, transform_indices = @transform_1, window_bounds = array<i64: 8, 128>}, {transform_indices = @transform_2, window_bounds = array<i64: 8, 8, 256>}]} {
    %c0 = arith.constant 0 : index
    %c0_0 = arith.constant 0 : index
    %0 = vector.load %arg3[%c0, %c0_0] : memref<8x128xf32, #tpu.memory_space<vmem>>, vector<8x128xf32>
    %1 = vector.shape_cast %0 : vector<8x128xf32> to vector<1x8x128xf32>
    %2 = vector.broadcast %1 : vector<1x8x128xf32> to vector<8x8x128xf32>
    %c0_1 = arith.constant 0 : index
    %c0_2 = arith.constant 0 : index
    %c0_3 = arith.constant 0 : index
    %3 = vector.load %arg2[%c0_1, %c0_2, %c0_3] : memref<8x128x256xf32, #tpu.memory_space<vmem>>, vector<8x128x256xf32>
    "tpu.trace_start"() <{level = 10 : i32, message = "bdc,bcp->bdp"}> : () -> ()
    %cst = arith.constant dense<0.000000e+00> : vector<8x8x256xf32>
    %4 = tpu.matmul %2, %3, %cst {dimension_numbers = #tpu.dot_dimension_numbers<[2], [1], [1], [2], [0, 0, 0, 1, 1, 2], [0], [0]>} : vector<8x8x128xf32>, vector<8x128x256xf32>, vector<8x8x256xf32> -> vector<8x8x256xf32>
    "tpu.trace_stop"() : () -> ()
    %cst_4 = arith.constant dense<0xFF800000> : vector<8x256xf32>
    %5 = vector.multi_reduction <maximumf>, %4, %cst_4 [1] : vector<8x8x256xf32> to vector<8x256xf32>
    %6 = vector.shape_cast %5 : vector<8x256xf32> to vector<8x1x256xf32>
    %7 = vector.broadcast %6 : vector<8x1x256xf32> to vector<8x8x256xf32>
    %8 = arith.subf %4, %7 : vector<8x8x256xf32>
    %9 = math.exp %8 : vector<8x8x256xf32>
    %cst_5 = arith.constant dense<0.000000e+00> : vector<8x256xf32>
    %10 = vector.multi_reduction <add>, %9, %cst_5 [1] : vector<8x8x256xf32> to vector<8x256xf32>
    %11 = vector.shape_cast %10 : vector<8x256xf32> to vector<8x1x256xf32>
    %12 = tpu.reciprocal %11 : vector<8x1x256xf32> -> vector<8x1x256xf32>
    %13 = vector.broadcast %12 : vector<8x1x256xf32> to vector<8x8x256xf32>
    %14 = arith.mulf %9, %13 : vector<8x8x256xf32>
    %c0_6 = arith.constant 0 : index
    %c0_7 = arith.constant 0 : index
    %c0_8 = arith.constant 0 : index
    %15 = vector.load %arg4[%c0_6, %c0_7, %c0_8] : memref<8x8x256xf32, #tpu.memory_space<vmem>>, vector<8x8x256xf32>
    tpu.vector_store %arg4[%c0_6, %c0_7, %c0_8], %14 {strides = array<i32>} : memref<8x8x256xf32, #tpu.memory_space<vmem>>, vector<8x8x256xf32>,
    return
  }
  func.func @transform_0(%arg0: i32, %arg1: i32) -> (i32, i32, i32) {
    %c0_i32 = arith.constant 0 : i32
    %c0_i32_0 = arith.constant 0 : i32
    return %arg0, %c0_i32, %arg1 : i32, i32, i32
  }
  func.func @transform_1(%arg0: i32, %arg1: i32) -> (i32, i32) {
    %c0_i32 = arith.constant 0 : i32
    %c0_i32_0 = arith.constant 0 : i32
    %c0_i32_1 = arith.constant 0 : i32
    return %c0_i32, %c0_i32_0 : i32, i32
  }
  func.func @transform_2(%arg0: i32, %arg1: i32) -> (i32, i32, i32) {
    %c0_i32 = arith.constant 0 : i32
    %c0_i32_0 = arith.constant 0 : i32
    return %arg0, %c0_i32, %arg1 : i32, i32, i32
  }
}

</mosaic_0001>

<llo_original>
// kernel: _forward.1
$region0: #{_forward.1}
  #allocation0 [shape = 'u32[]', space=smem, size = 0x4, offset = 0x4, fixed_abs, tag = 'smem constant byte address 0x4 - core index']
  #allocation1 [shape = 'u32[144,128]{1,0:T(1,128)}', space=vmem, size = 0x12000, scoped, tag = 'internal scratch']
  %s0 = inlined_call_operand.vmem [shape: f32[16,128,256], index: 0, kind: input, shape index: {}]
  %s1 = inlined_call_operand.vmem [shape: f32[8,128], index: 1, kind: input, shape index: {}]
  %s2 = inlined_call_operand.vmem [shape: f32[16,8,256], index: 2, kind: output, shape index: {}]
  %s3 = sld [smem:[#allocation0]]
  $region41: #{_forward.1} parent=0
    _
  %s5 = ssub.s32 1, %s3
  %s6 = scalar_select 0, %s5, %s3
  loop: start=0, step=1, limit=4
  $region2: #{_forward.1} parent=0 // loop_pre_header
    _
  $region3: #{_forward.1} parent=0 // loop_header
    %s8 = sphi 0, %s12
    %p9 = scmp.ge.s32.totalorder %s8, 4
    %s15 = sphi 0, %s27
    %s16 = sphi 0, %s23
    %s17 = sphi 0, %s15
    %s18 = sphi 0, %s16
    %s19 = sphi 0, %s17
    %s20 = sphi 0, %s18
    %s32 = sphi 0, %s34
    %s35 = sphi 0, %s32
    %s36 = sphi 0, %s35
    %s52 = sphi 0, %s36
    %s56 = sphi 0, %s56
    %s58 = sphi 0, %s56
    %s59 = sphi 0, %s58
    %s73 = sphi 0, %s59
    %s81 = sphi 0, %s83
    %s84 = sphi 0, %s81
    %s85 = sphi 0, %s84
    %s101 = sphi 0, %s85
  $region4: #{_forward.1} parent=0 // loop_header_branch
    %11 = sbr.rel (%p9) target = $region8
  $region5: #{_forward.1} parent=0 // loop_body
    %s13 = ssub.s32 %s8, 1
    %s14 = ssub.s32 %s8, 2
    %s21 = sadd.s32 1, %s16
    %p22 = scmp.ge.s32.totalorder %s21, 1
    %s23 = scalar_select %p22, 0, %s21
    %s24 = sadd.s32 1, %s15
    %s25 = scalar_select %p22, %s24, %s15
    %p26 = scmp.ge.s32.totalorder %s25, 2
    %s27 = scalar_select %p26, 0, %s25
    %s28 = ssub.s32 %s15, %s27
    %s29 = ssub.s32 %s16, %s23
    %s30 = sor.u32 %s28, %s29
    %p31 = scmp.eq.s32.totalorder %s30, 0
    %s33 = sadd.s32 %s32, 1
    %s34 = scalar_select %p31, %s32, %s33
    %p37 = pneg %p31
    %p38 = scmp.eq.s32.totalorder %s8, 1
    %p39 = por %p37, %p38
    %p40 = scmp.ne.s32.totalorder %s32, %s35
    %p41 = scmp.eq.s32.totalorder %s8, 0
    %p42 = por %p40, %p41
    %p43 = scmp.ne.s32.totalorder %s32, %s35
    %p44 = scmp.eq.s32.totalorder %s13, 1
    %p45 = por %p43, %p44
    %p46 = scmp.ne.s32.totalorder %s35, %s36
    %p47 = scmp.eq.s32.totalorder %s13, 0
    %p48 = por %p46, %p47
    %p49 = scmp.ne.s32.totalorder %s35, %s36
    %p50 = scmp.eq.s32.totalorder %s14, 1
    %p51 = por %p49, %p50
    %p53 = scmp.ne.s32.totalorder %s36, %s52
    %p54 = scmp.eq.s32.totalorder %s14, 0
    %p55 = por %p53, %p54
    %s57 = sadd.s32 %s56, 1
    %p60 = scmp.eq.s32.totalorder %s8, 1
    %p61 = scmp.ne.s32.totalorder %s56, %s58
    %p62 = scmp.eq.s32.totalorder %s8, 0
    %p63 = por %p61, %p62
    %p64 = scmp.ne.s32.totalorder %s56, %s58
    %p65 = scmp.eq.s32.totalorder %s13, 1
    %p66 = por %p64, %p65
    %p67 = scmp.ne.s32.totalorder %s58, %s59
    %p68 = scmp.eq.s32.totalorder %s13, 0
    %p69 = por %p67, %p68
    %p70 = scmp.ne.s32.totalorder %s58, %s59
    %p71 = scmp.eq.s32.totalorder %s14, 1
    %p72 = por %p70, %p71
    %p74 = scmp.ne.s32.totalorder %s59, %s73
    %p75 = scmp.eq.s32.totalorder %s14, 0
    %p76 = por %p74, %p75
    %s77 = ssub.s32 %s15, %s27
    %s78 = ssub.s32 %s16, %s23
    %s79 = sor.u32 %s77, %s78
    %p80 = scmp.eq.s32.totalorder %s79, 0
    %s82 = sadd.s32 %s81, 1
    %s83 = scalar_select %p80, %s81, %s82
    %p86 = pneg %p80
    %p87 = scmp.eq.s32.totalorder %s8, 1
    %p88 = por %p86, %p87
    %p89 = scmp.ne.s32.totalorder %s81, %s84
    %p90 = scmp.eq.s32.totalorder %s8, 0
    %p91 = por %p89, %p90
    %p92 = scmp.ne.s32.totalorder %s81, %s84
    %p93 = scmp.eq.s32.totalorder %s13, 1
    %p94 = por %p92, %p93
    %p95 = scmp.ne.s32.totalorder %s84, %s85
    %p96 = scmp.eq.s32.totalorder %s13, 0
    %p97 = por %p95, %p96
    %p98 = scmp.ne.s32.totalorder %s84, %s85
    %p99 = scmp.eq.s32.totalorder %s14, 1
    %p100 = por %p98, %p99
    %p102 = scmp.ne.s32.totalorder %s85, %s101
    %p103 = scmp.eq.s32.totalorder %s14, 0
    %p104 = por %p102, %p103
    %p105 = scmp.le.s32.totalorder 1, %s8
    %p106 = scmp.lt.s32.totalorder %s8, 3
    %p107 = pnand %p105, %p106
    %p108 = pneg %p107
    // Predicated region
    $region9: #{_forward.1} parent=5 // pred_check
      _
    $region10: #{_forward.1} parent=5 // pred_check_branch
      %110 = sbr.rel (%p107) target = $region12
    $region11: #{_forward.1} parent=5 // pred_region
      %s111 = ssub.s32 %s8, 1
      // Predicated region
      $region13: #{_forward.1} parent=11 // pred_check
        %p112 = pneg %p69
      $region14: #{_forward.1} parent=11 // pred_check_branch
        %114 = sbr.rel (%p112) target = $region16
      $region15: #{_forward.1} parent=11 // pred_region
        _
      $region16: #{_forward.1} parent=11 // pred_fallthru
        _
    $region12: #{_forward.1} parent=5 // pred_fallthru
      _
    %p115 = scmp.lt.s32.totalorder %s8, 2
    // Predicated region
    $region17: #{_forward.1} parent=5 // pred_check
      %p116 = pneg %p115
    $region18: #{_forward.1} parent=5 // pred_check_branch
      %118 = sbr.rel (%p116) target = $region20
    $region19: #{_forward.1} parent=5 // pred_region
      // Predicated region
      $region21: #{_forward.1} parent=19 // pred_check
        %p119 = pneg %p42
      $region22: #{_forward.1} parent=19 // pred_check_branch
        %121 = sbr.rel (%p119) target = $region24
      $region23: #{_forward.1} parent=19 // pred_region
        %s122 = smul.u32 8, %s15
        %s123 = smul.u32 2, %s16
        %p124 = scmp.lt.s32.totalorder %s122, 15
        %s125 = scalar_select %p124, %s122, 15
        %p126 = scmp.lt.s32.totalorder %s123, 1
        %s127 = scalar_select %p126, %s123, 1
        %s128 = smul.addr %s125, 32
        %s129 = sadd.s32 %s127, %s128
        %s130 = smul.addr %s129, 8
        %s131 = scalar_lea.vmem %s0, %s130
        %s132 = smul.u32 8, %s15
        %s133 = smul.u32 2, %s16
      $region24: #{_forward.1} parent=19 // pred_fallthru
        _
    $region20: #{_forward.1} parent=5 // pred_fallthru
      _
    %p134 = scmp.le.s32.totalorder 1, %s8
    %p135 = scmp.lt.s32.totalorder %s8, 3
    %p136 = pnand %p134, %p135
    %p137 = pneg %p136
    // Predicated region
    $region25: #{_forward.1} parent=5 // pred_check
      _
    $region26: #{_forward.1} parent=5 // pred_check_branch
      %139 = sbr.rel (%p136) target = $region28
    $region27: #{_forward.1} parent=5 // pred_region
      %s140 = ssub.s32 %s8, 1
      %s141 = smul.u32 8, %s17
      %s142 = smul.u32 2, %s18
      %p143 = scmp.lt.s32.totalorder %s141, 15
      %s144 = scalar_select %p143, %s141, 15
      %p145 = scmp.lt.s32.totalorder %s142, 1
      %s146 = scalar_select %p145, %s142, 1
      %s147 = smul.addr %s144, 32
      %s148 = sadd.s32 %s146, %s147
      %s149 = smul.addr %s148, 8
      %s150 = scalar_lea.vmem %s0, %s149
      %p151 = pneg %p48
      %p152 = pneg %p45
      %p153 = pneg %p69
      %p154 = pneg %p66
      %p155 = pneg %p97
      %p156 = pneg %p94
      %s157 = smul.u32 8, %s17
      %s158 = smul.u32 2, %s18
      %p159 = scmp.lt.s32.totalorder %s157, 15
      %s160 = scalar_select %p159, %s157, 15
      %p161 = scmp.lt.s32.totalorder %s158, 1
      %s162 = scalar_select %p161, %s158, 1
      %s163 = smul.addr %s160, 2
      %s164 = sadd.s32 %s162, %s163
      %s165 = smul.addr %s164, 8
      %s166 = scalar_lea.vmem %s2, %s165
      %s167 = smul.u32 8, %s17
      %s168 = smul.u32 2, %s18
      %p169 = scmp.lt.s32.totalorder %s167, 15
      %s170 = scalar_select %p169, %s167, 15
      %p171 = scmp.lt.s32.totalorder %s168, 1
      %s172 = scalar_select %p171, %s168, 1
      %s173 = smul.addr %s170, 32
      %s174 = sadd.s32 %s172, %s173
      %s175 = smul.addr %s174, 8
      %s176 = scalar_lea.vmem %s0, %s175
      %s177 = smul.u32 8, %s17
      %s178 = smul.u32 2, %s18
      %s179 = smul.u32 8, %s17
      %s180 = smul.u32 2, %s18
      %p181 = scmp.lt.s32.totalorder %s179, 15
      %s182 = scalar_select %p181, %s179, 15
      %p183 = scmp.lt.s32.totalorder %s180, 1
      %s184 = scalar_select %p183, %s180, 1
      %s185 = smul.addr %s182, 2
      %s186 = sadd.s32 %s184, %s185
      %s187 = smul.addr %s186, 8
      %s188 = scalar_lea.vmem %s2, %s187
      %s189 = smul.u32 8, %s17
      %s190 = smul.u32 2, %s18
      %v191 = vld [vmem:[%s1] sm:$0xff]
      %v192 = vld [vmem:[%s176] sm:$0xff]
      %v193 = vld [vmem:[%s176 + $0x8] sm:$0xff]
      %v194 = vld [vmem:[%s176 + $0x10] sm:$0xff]
      %v195 = vld [vmem:[%s176 + $0x18] sm:$0xff]
      %v196 = vld [vmem:[%s176 + $0x20] sm:$0xff]
      %v197 = vld [vmem:[%s176 + $0x28] sm:$0xff]
      %v198 = vld [vmem:[%s176 + $0x30] sm:$0xff]
      %v199 = vld [vmem:[%s176 + $0x38] sm:$0xff]
      %v200 = vld [vmem:[%s176 + $0x40] sm:$0xff]
      %v201 = vld [vmem:[%s176 + $0x48] sm:$0xff]
      %v202 = vld [vmem:[%s176 + $0x50] sm:$0xff]
      %v203 = vld [vmem:[%s176 + $0x58] sm:$0xff]
      %v204 = vld [vmem:[%s176 + $0x60] sm:$0xff]
      %v205 = vld [vmem:[%s176 + $0x68] sm:$0xff]
      %v206 = vld [vmem:[%s176 + $0x70] sm:$0xff]
      %v207 = vld [vmem:[%s176 + $0x78] sm:$0xff]
      %v208 = vld [vmem:[%s176 + $0x80] sm:$0xff]
      %v209 = vld [vmem:[%s176 + $0x88] sm:$0xff]
      %v210 = vld [vmem:[%s176 + $0x90] sm:$0xff]
      %v211 = vld [vmem:[%s176 + $0x98] sm:$0xff]
      %v212 = vld [vmem:[%s176 + $0xa0] sm:$0xff]
      %v213 = vld [vmem:[%s176 + $0xa8] sm:$0xff]
      %v214 = vld [vmem:[%s176 + $0xb0] sm:$0xff]
      %v215 = vld [vmem:[%s176 + $0xb8] sm:$0xff]
      %v216 = vld [vmem:[%s176 + $0xc0] sm:$0xff]
      %v217 = vld [vmem:[%s176 + $0xc8] sm:$0xff]
      %v218 = vld [vmem:[%s176 + $0xd0] sm:$0xff]
      %v219 = vld [vmem:[%s176 + $0xd8] sm:$0xff]
      %v220 = vld [vmem:[%s176 + $0xe0] sm:$0xff]
      %v221 = vld [vmem:[%s176 + $0xe8] sm:$0xff]
      %v222 = vld [vmem:[%s176 + $0xf0] sm:$0xff]
      %v223 = vld [vmem:[%s176 + $0xf8] sm:$0xff]
      %v224 = vld [vmem:[%s176 + $0x100] sm:$0xff]
      %v225 = vld [vmem:[%s176 + $0x108] sm:$0xff]
      %v226 = vld [vmem:[%s176 + $0x110] sm:$0xff]
      %v227 = vld [vmem:[%s176 + $0x118] sm:$0xff]
      %v228 = vld [vmem:[%s176 + $0x120] sm:$0xff]
      %v229 = vld [vmem:[%s176 + $0x128] sm:$0xff]
      %v230 = vld [vmem:[%s176 + $0x130] sm:$0xff]
      %v231 = vld [vmem:[%s176 + $0x138] sm:$0xff]
      %v232 = vld [vmem:[%s176 + $0x140] sm:$0xff]
      %v233 = vld [vmem:[%s176 + $0x148] sm:$0xff]
      %v234 = vld [vmem:[%s176 + $0x150] sm:$0xff]
      %v235 = vld [vmem:[%s176 + $0x158] sm:$0xff]
      %v236 = vld [vmem:[%s176 + $0x160] sm:$0xff]
      %v237 = vld [vmem:[%s176 + $0x168] sm:$0xff]
      %v238 = vld [vmem:[%s176 + $0x170] sm:$0xff]
      %v239 = vld [vmem:[%s176 + $0x178] sm:$0xff]
      %v240 = vld [vmem:[%s176 + $0x180] sm:$0xff]
      %v241 = vld [vmem:[%s176 + $0x188] sm:$0xff]
      %v242 = vld [vmem:[%s176 + $0x190] sm:$0xff]
      %v243 = vld [vmem:[%s176 + $0x198] sm:$0xff]
      %v244 = vld [vmem:[%s176 + $0x1a0] sm:$0xff]
      %v245 = vld [vmem:[%s176 + $0x1a8] sm:$0xff]
      %v246 = vld [vmem:[%s176 + $0x1b0] sm:$0xff]
      %v247 = vld [vmem:[%s176 + $0x1b8] sm:$0xff]
      %v248 = vld [vmem:[%s176 + $0x1c0] sm:$0xff]
      %v249 = vld [vmem:[%s176 + $0x1c8] sm:$0xff]
      %v250 = vld [vmem:[%s176 + $0x1d0] sm:$0xff]
      %v251 = vld [vmem:[%s176 + $0x1d8] sm:$0xff]
      %v252 = vld [vmem:[%s176 + $0x1e0] sm:$0xff]
      %v253 = vld [vmem:[%s176 + $0x1e8] sm:$0xff]
      %v254 = vld [vmem:[%s176 + $0x1f0] sm:$0xff]
      %v255 = vld [vmem:[%s176 + $0x1f8] sm:$0xff]
      %v256 = vld [vmem:[%s176 + $0x200] sm:$0xff]
      %v257 = vld [vmem:[%s176 + $0x208] sm:$0xff]
      %v258 = vld [vmem:[%s176 + $0x210] sm:$0xff]
      %v259 = vld [vmem:[%s176 + $0x218] sm:$0xff]
      %v260 = vld [vmem:[%s176 + $0x220] sm:$0xff]
      %v261 = vld [vmem:[%s176 + $0x228] sm:$0xff]
      %v262 = vld [vmem:[%s176 + $0x230] sm:$0xff]
      %v263 = vld [vmem:[%s176 + $0x238] sm:$0xff]
      %v264 = vld [vmem:[%s176 + $0x240] sm:$0xff]
      %v265 = vld [vmem:[%s176 + $0x248] sm:$0xff]
      %v266 = vld [vmem:[%s176 + $0x250] sm:$0xff]
      %v267 = vld [vmem:[%s176 + $0x258] sm:$0xff]
      %v268 = vld [vmem:[%s176 + $0x260] sm:$0xff]
      %v269 = vld [vmem:[%s176 + $0x268] sm:$0xff]
      %v270 = vld [vmem:[%s176 + $0x270] sm:$0xff]
      %v271 = vld [vmem:[%s176 + $0x278] sm:$0xff]
      %v272 = vld [vmem:[%s176 + $0x280] sm:$0xff]
      %v273 = vld [vmem:[%s176 + $0x288] sm:$0xff]
      %v274 = vld [vmem:[%s176 + $0x290] sm:$0xff]
      %v275 = vld [vmem:[%s176 + $0x298] sm:$0xff]
      %v276 = vld [vmem:[%s176 + $0x2a0] sm:$0xff]
      %v277 = vld [vmem:[%s176 + $0x2a8] sm:$0xff]
      %v278 = vld [vmem:[%s176 + $0x2b0] sm:$0xff]
      %v279 = vld [vmem:[%s176 + $0x2b8] sm:$0xff]
      %v280 = vld [vmem:[%s176 + $0x2c0] sm:$0xff]
      %v281 = vld [vmem:[%s176 + $0x2c8] sm:$0xff]
      %v282 = vld [vmem:[%s176 + $0x2d0] sm:$0xff]
      %v283 = vld [vmem:[%s176 + $0x2d8] sm:$0xff]
      %v284 = vld [vmem:[%s176 + $0x2e0] sm:$0xff]
      %v285 = vld [vmem:[%s176 + $0x2e8] sm:$0xff]
      %v286 = vld [vmem:[%s176 + $0x2f0] sm:$0xff]
      %v287 = vld [vmem:[%s176 + $0x2f8] sm:$0xff]
      %v288 = vld [vmem:[%s176 + $0x300] sm:$0xff]
      %v289 = vld [vmem:[%s176 + $0x308] sm:$0xff]
      %v290 = vld [vmem:[%s176 + $0x310] sm:$0xff]
      %v291 = vld [vmem:[%s176 + $0x318] sm:$0xff]
      %v292 = vld [vmem:[%s176 + $0x320] sm:$0xff]
      %v293 = vld [vmem:[%s176 + $0x328] sm:$0xff]
      %v294 = vld [vmem:[%s176 + $0x330] sm:$0xff]
      %v295 = vld [vmem:[%s176 + $0x338] sm:$0xff]
      %v296 = vld [vmem:[%s176 + $0x340] sm:$0xff]
      %v297 = vld [vmem:[%s176 + $0x348] sm:$0xff]
      %v298 = vld [vmem:[%s176 + $0x350] sm:$0xff]
      %v299 = vld [vmem:[%s176 + $0x358] sm:$0xff]
      %v300 = vld [vmem:[%s176 + $0x360] sm:$0xff]
      %v301 = vld [vmem:[%s176 + $0x368] sm:$0xff]
      %v302 = vld [vmem:[%s176 + $0x370] sm:$0xff]
      %v303 = vld [vmem:[%s176 + $0x378] sm:$0xff]
      %v304 = vld [vmem:[%s176 + $0x380] sm:$0xff]
      %v305 = vld [vmem:[%s176 + $0x388] sm:$0xff]
      %v306 = vld [vmem:[%s176 + $0x390] sm:$0xff]
      %v307 = vld [vmem:[%s176 + $0x398] sm:$0xff]
      %v308 = vld [vmem:[%s176 + $0x3a0] sm:$0xff]
      %v309 = vld [vmem:[%s176 + $0x3a8] sm:$0xff]
      %v310 = vld [vmem:[%s176 + $0x3b0] sm:$0xff]
      %v311 = vld [vmem:[%s176 + $0x3b8] sm:$0xff]
      %v312 = vld [vmem:[%s176 + $0x3c0] sm:$0xff]
      %v313 = vld [vmem:[%s176 + $0x3c8] sm:$0xff]
      %v314 = vld [vmem:[%s176 + $0x3d0] sm:$0xff]
      %v315 = vld [vmem:[%s176 + $0x3d8] sm:$0xff]
      %v316 = vld [vmem:[%s176 + $0x3e0] sm:$0xff]
      %v317 = vld [vmem:[%s176 + $0x3e8] sm:$0xff]
      %v318 = vld [vmem:[%s176 + $0x3f0] sm:$0xff]
      %v319 = vld [vmem:[%s176 + $0x3f8] sm:$0xff]
      %v320 = vld [vmem:[%s176 + $0x400] sm:$0xff]
      %v321 = vld [vmem:[%s176 + $0x408] sm:$0xff]
      %v322 = vld [vmem:[%s176 + $0x410] sm:$0xff]
      %v323 = vld [vmem:[%s176 + $0x418] sm:$0xff]
      %v324 = vld [vmem:[%s176 + $0x420] sm:$0xff]
      %v325 = vld [vmem:[%s176 + $0x428] sm:$0xff]
      %v326 = vld [vmem:[%s176 + $0x430] sm:$0xff]
      %v327 = vld [vmem:[%s176 + $0x438] sm:$0xff]
      %v328 = vld [vmem:[%s176 + $0x440] sm:$0xff]
      %v329 = vld [vmem:[%s176 + $0x448] sm:$0xff]
      %v330 = vld [vmem:[%s176 + $0x450] sm:$0xff]
      %v331 = vld [vmem:[%s176 + $0x458] sm:$0xff]
      %v332 = vld [vmem:[%s176 + $0x460] sm:$0xff]
      %v333 = vld [vmem:[%s176 + $0x468] sm:$0xff]
      %v334 = vld [vmem:[%s176 + $0x470] sm:$0xff]
      %v335 = vld [vmem:[%s176 + $0x478] sm:$0xff]
      %v336 = vld [vmem:[%s176 + $0x480] sm:$0xff]
      %v337 = vld [vmem:[%s176 + $0x488] sm:$0xff]
      %v338 = vld [vmem:[%s176 + $0x490] sm:$0xff]
      %v339 = vld [vmem:[%s176 + $0x498] sm:$0xff]
      %v340 = vld [vmem:[%s176 + $0x4a0] sm:$0xff]
      %v341 = vld [vmem:[%s176 + $0x4a8] sm:$0xff]
      %v342 = vld [vmem:[%s176 + $0x4b0] sm:$0xff]
      %v343 = vld [vmem:[%s176 + $0x4b8] sm:$0xff]
      %v344 = vld [vmem:[%s176 + $0x4c0] sm:$0xff]
      %v345 = vld [vmem:[%s176 + $0x4c8] sm:$0xff]
      %v346 = vld [vmem:[%s176 + $0x4d0] sm:$0xff]
      %v347 = vld [vmem:[%s176 + $0x4d8] sm:$0xff]
      %v348 = vld [vmem:[%s176 + $0x4e0] sm:$0xff]
      %v349 = vld [vmem:[%s176 + $0x4e8] sm:$0xff]
      %v350 = vld [vmem:[%s176 + $0x4f0] sm:$0xff]
      %v351 = vld [vmem:[%s176 + $0x4f8] sm:$0xff]
      %v352 = vld [vmem:[%s176 + $0x500] sm:$0xff]
      %v353 = vld [vmem:[%s176 + $0x508] sm:$0xff]
      %v354 = vld [vmem:[%s176 + $0x510] sm:$0xff]
      %v355 = vld [vmem:[%s176 + $0x518] sm:$0xff]
      %v356 = vld [vmem:[%s176 + $0x520] sm:$0xff]
      %v357 = vld [vmem:[%s176 + $0x528] sm:$0xff]
      %v358 = vld [vmem:[%s176 + $0x530] sm:$0xff]
      %v359 = vld [vmem:[%s176 + $0x538] sm:$0xff]
      %v360 = vld [vmem:[%s176 + $0x540] sm:$0xff]
      %v361 = vld [vmem:[%s176 + $0x548] sm:$0xff]
      %v362 = vld [vmem:[%s176 + $0x550] sm:$0xff]
      %v363 = vld [vmem:[%s176 + $0x558] sm:$0xff]
      %v364 = vld [vmem:[%s176 + $0x560] sm:$0xff]
      %v365 = vld [vmem:[%s176 + $0x568] sm:$0xff]
      %v366 = vld [vmem:[%s176 + $0x570] sm:$0xff]
      %v367 = vld [vmem:[%s176 + $0x578] sm:$0xff]
      %v368 = vld [vmem:[%s176 + $0x580] sm:$0xff]
      %v369 = vld [vmem:[%s176 + $0x588] sm:$0xff]
      %v370 = vld [vmem:[%s176 + $0x590] sm:$0xff]
      %v371 = vld [vmem:[%s176 + $0x598] sm:$0xff]
      %v372 = vld [vmem:[%s176 + $0x5a0] sm:$0xff]
      %v373 = vld [vmem:[%s176 + $0x5a8] sm:$0xff]
      %v374 = vld [vmem:[%s176 + $0x5b0] sm:$0xff]
      %v375 = vld [vmem:[%s176 + $0x5b8] sm:$0xff]
      %v376 = vld [vmem:[%s176 + $0x5c0] sm:$0xff]
      %v377 = vld [vmem:[%s176 + $0x5c8] sm:$0xff]
      %v378 = vld [vmem:[%s176 + $0x5d0] sm:$0xff]
      %v379 = vld [vmem:[%s176 + $0x5d8] sm:$0xff]
      %v380 = vld [vmem:[%s176 + $0x5e0] sm:$0xff]
      %v381 = vld [vmem:[%s176 + $0x5e8] sm:$0xff]
      %v382 = vld [vmem:[%s176 + $0x5f0] sm:$0xff]
      %v383 = vld [vmem:[%s176 + $0x5f8] sm:$0xff]
      %v384 = vld [vmem:[%s176 + $0x600] sm:$0xff]
      %v385 = vld [vmem:[%s176 + $0x608] sm:$0xff]
      %v386 = vld [vmem:[%s176 + $0x610] sm:$0xff]
      %v387 = vld [vmem:[%s176 + $0x618] sm:$0xff]
      %v388 = vld [vmem:[%s176 + $0x620] sm:$0xff]
      %v389 = vld [vmem:[%s176 + $0x628] sm:$0xff]
      %v390 = vld [vmem:[%s176 + $0x630] sm:$0xff]
      %v391 = vld [vmem:[%s176 + $0x638] sm:$0xff]
      %v392 = vld [vmem:[%s176 + $0x640] sm:$0xff]
      %v393 = vld [vmem:[%s176 + $0x648] sm:$0xff]
      %v394 = vld [vmem:[%s176 + $0x650] sm:$0xff]
      %v395 = vld [vmem:[%s176 + $0x658] sm:$0xff]
      %v396 = vld [vmem:[%s176 + $0x660] sm:$0xff]
      %v397 = vld [vmem:[%s176 + $0x668] sm:$0xff]
      %v398 = vld [vmem:[%s176 + $0x670] sm:$0xff]
      %v399 = vld [vmem:[%s176 + $0x678] sm:$0xff]
      %v400 = vld [vmem:[%s176 + $0x680] sm:$0xff]
      %v401 = vld [vmem:[%s176 + $0x688] sm:$0xff]
      %v402 = vld [vmem:[%s176 + $0x690] sm:$0xff]
      %v403 = vld [vmem:[%s176 + $0x698] sm:$0xff]
      %v404 = vld [vmem:[%s176 + $0x6a0] sm:$0xff]
      %v405 = vld [vmem:[%s176 + $0x6a8] sm:$0xff]
      %v406 = vld [vmem:[%s176 + $0x6b0] sm:$0xff]
      %v407 = vld [vmem:[%s176 + $0x6b8] sm:$0xff]
      %v408 = vld [vmem:[%s176 + $0x6c0] sm:$0xff]
      %v409 = vld [vmem:[%s176 + $0x6c8] sm:$0xff]
      %v410 = vld [vmem:[%s176 + $0x6d0] sm:$0xff]
      %v411 = vld [vmem:[%s176 + $0x6d8] sm:$0xff]
      %v412 = vld [vmem:[%s176 + $0x6e0] sm:$0xff]
      %v413 = vld [vmem:[%s176 + $0x6e8] sm:$0xff]
      %v414 = vld [vmem:[%s176 + $0x6f0] sm:$0xff]
      %v415 = vld [vmem:[%s176 + $0x6f8] sm:$0xff]
      %v416 = vld [vmem:[%s176 + $0x700] sm:$0xff]
      %v417 = vld [vmem:[%s176 + $0x708] sm:$0xff]
      %v418 = vld [vmem:[%s176 + $0x710] sm:$0xff]
      %v419 = vld [vmem:[%s176 + $0x718] sm:$0xff]
      %v420 = vld [vmem:[%s176 + $0x720] sm:$0xff]
      %v421 = vld [vmem:[%s176 + $0x728] sm:$0xff]
      %v422 = vld [vmem:[%s176 + $0x730] sm:$0xff]
      %v423 = vld [vmem:[%s176 + $0x738] sm:$0xff]
      %v424 = vld [vmem:[%s176 + $0x740] sm:$0xff]
      %v425 = vld [vmem:[%s176 + $0x748] sm:$0xff]
      %v426 = vld [vmem:[%s176 + $0x750] sm:$0xff]
      %v427 = vld [vmem:[%s176 + $0x758] sm:$0xff]
      %v428 = vld [vmem:[%s176 + $0x760] sm:$0xff]
      %v429 = vld [vmem:[%s176 + $0x768] sm:$0xff]
      %v430 = vld [vmem:[%s176 + $0x770] sm:$0xff]
      %v431 = vld [vmem:[%s176 + $0x778] sm:$0xff]
      %v432 = vld [vmem:[%s176 + $0x780] sm:$0xff]
      %v433 = vld [vmem:[%s176 + $0x788] sm:$0xff]
      %v434 = vld [vmem:[%s176 + $0x790] sm:$0xff]
      %v435 = vld [vmem:[%s176 + $0x798] sm:$0xff]
      %v436 = vld [vmem:[%s176 + $0x7a0] sm:$0xff]
      %v437 = vld [vmem:[%s176 + $0x7a8] sm:$0xff]
      %v438 = vld [vmem:[%s176 + $0x7b0] sm:$0xff]
      %v439 = vld [vmem:[%s176 + $0x7b8] sm:$0xff]
      %v440 = vld [vmem:[%s176 + $0x7c0] sm:$0xff]
      %v441 = vld [vmem:[%s176 + $0x7c8] sm:$0xff]
      %v442 = vld [vmem:[%s176 + $0x7d0] sm:$0xff]
      %v443 = vld [vmem:[%s176 + $0x7d8] sm:$0xff]
      %v444 = vld [vmem:[%s176 + $0x7e0] sm:$0xff]
      %v445 = vld [vmem:[%s176 + $0x7e8] sm:$0xff]
      %v446 = vld [vmem:[%s176 + $0x7f0] sm:$0xff]
      %v447 = vld [vmem:[%s176 + $0x7f8] sm:$0xff]
      %448 = vmatprep.subr.mxu0 %v223
      %449 = vmatpush1.msra.mxu0 %v222
      %450 = vmatprep.subr.mxu0 %v221
      %451 = vmatpush1.msra.mxu0 %v220
      %452 = vmatprep.subr.mxu0 %v219
      %453 = vmatpush1.msra.mxu0 %v218
      %454 = vmatprep.subr.mxu0 %v217
      %455 = vmatpush1.msra.mxu0 %v216
      %456 = vmatprep.subr.mxu0 %v215
      %457 = vmatpush1.msra.mxu0 %v214
      %458 = vmatprep.subr.mxu0 %v213
      %459 = vmatpush1.msra.mxu0 %v212
      %460 = vmatprep.subr.mxu0 %v211
      %461 = vmatpush1.msra.mxu0 %v210
      %462 = vmatprep.subr.mxu0 %v209
      %463 = vmatpush1.msra.mxu0 %v208
      %464 = vmatprep.subr.mxu0 %v207
      %465 = vmatpush1.msra.mxu0 %v206
      %466 = vmatprep.subr.mxu0 %v205
      %467 = vmatpush1.msra.mxu0 %v204
      %468 = vmatprep.subr.mxu0 %v203
      %469 = vmatpush1.msra.mxu0 %v202
      %470 = vmatprep.subr.mxu0 %v201
      %471 = vmatpush1.msra.mxu0 %v200
      %472 = vmatprep.subr.mxu0 %v199
      %473 = vmatpush1.msra.mxu0 %v198
      %474 = vmatprep.subr.mxu0 %v197
      %475 = vmatpush1.msra.mxu0 %v196
      %476 = vmatprep.subr.mxu0 %v195
      %477 = vmatpush1.msra.mxu0 %v194
      %478 = vmatprep.subr.mxu0 %v193
      %479 = vmatpush1.msra.mxu0 %v192
      %480 = vmatprep.subr.mxu0 0.0
      %481 = vmatpush2.msra.mxu0 0.0
      %482 = vmatprep.subr.mxu0 0.0
      %483 = vmatpush2.msra.mxu0 0.0
      %484 = vmatprep.subr.mxu0 0.0
      %485 = vmatpush2.msra.mxu0 0.0
      %486 = vmatprep.subr.mxu0 0.0
      %487 = vmatpush2.msra.mxu0 0.0
      %488 = vmatprep.subr.mxu0 0.0
      %489 = vmatpush2.msra.mxu0 0.0
      %490 = vmatprep.subr.mxu0 0.0
      %491 = vmatpush2.msra.mxu0 0.0
      %492 = vmatprep.subr.mxu0 0.0
      %493 = vmatpush2.msra.mxu0 0.0
      %494 = vmatprep.subr.mxu0 0.0
      %495 = vmatpush2.msra.mxu0 0.0
      %496 = vmatprep.subr.mxu0 0.0
      %497 = vmatpush2.msra.mxu0 0.0
      %498 = vmatprep.subr.mxu0 0.0
      %499 = vmatpush2.msra.mxu0 0.0
      %500 = vmatprep.subr.mxu0 0.0
      %501 = vmatpush2.msra.mxu0 0.0
      %502 = vmatprep.subr.mxu0 0.0
      %503 = vmatpush2.msra.mxu0 0.0
      %504 = vmatprep.subr.mxu0 0.0
      %505 = vmatpush2.msra.mxu0 0.0
      %506 = vmatprep.subr.mxu0 0.0
      %507 = vmatpush2.msra.mxu0 0.0
      %508 = vmatprep.subr.mxu0 0.0
      %509 = vmatpush2.msra.mxu0 0.0
      %510 = vmatprep.subr.mxu0 0.0
      %511 = vmatpush2.msra.mxu0 0.0
      %512 = vmatprep.mubr.f32.mxu0 0.0
      %513 = vmatmul.mubr.f32.gmra.mxu0 %v191
      %v514 = vpop.f32.mrf.mxu0
      %v515 = vadd.f32 0.0, %v514
      %v516 = vpop.f32.mrf.mxu0
      %v517 = vadd.f32 0.0, %v516
      %518 = vdwg.mxu0
      %519 = vmatprep.subr.mxu0 %v255
      %520 = vmatpush1.msra.mxu0 %v254
      %521 = vmatprep.subr.mxu0 %v253
      %522 = vmatpush1.msra.mxu0 %v252
      %523 = vmatprep.subr.mxu0 %v251
      %524 = vmatpush1.msra.mxu0 %v250
      %525 = vmatprep.subr.mxu0 %v249
      %526 = vmatpush1.msra.mxu0 %v248
      %527 = vmatprep.subr.mxu0 %v247
      %528 = vmatpush1.msra.mxu0 %v246
      %529 = vmatprep.subr.mxu0 %v245
      %530 = vmatpush1.msra.mxu0 %v244
      %531 = vmatprep.subr.mxu0 %v243
      %532 = vmatpush1.msra.mxu0 %v242
      %533 = vmatprep.subr.mxu0 %v241
      %534 = vmatpush1.msra.mxu0 %v240
      %535 = vmatprep.subr.mxu0 %v239
      %536 = vmatpush1.msra.mxu0 %v238
      %537 = vmatprep.subr.mxu0 %v237
      %538 = vmatpush1.msra.mxu0 %v236
      %539 = vmatprep.subr.mxu0 %v235
      %540 = vmatpush1.msra.mxu0 %v234
      %541 = vmatprep.subr.mxu0 %v233
      %542 = vmatpush1.msra.mxu0 %v232
      %543 = vmatprep.subr.mxu0 %v231
      %544 = vmatpush1.msra.mxu0 %v230
      %545 = vmatprep.subr.mxu0 %v229
      %546 = vmatpush1.msra.mxu0 %v228
      %547 = vmatprep.subr.mxu0 %v227
      %548 = vmatpush1.msra.mxu0 %v226
      %549 = vmatprep.subr.mxu0 %v225
      %550 = vmatpush1.msra.mxu0 %v224
      %551 = vmatprep.subr.mxu0 0.0
      %552 = vmatpush2.msra.mxu0 0.0
      %553 = vmatprep.subr.mxu0 0.0
      %554 = vmatpush2.msra.mxu0 0.0
      %555 = vmatprep.subr.mxu0 0.0
      %556 = vmatpush2.msra.mxu0 0.0
      %557 = vmatprep.subr.mxu0 0.0
      %558 = vmatpush2.msra.mxu0 0.0
      %559 = vmatprep.subr.mxu0 0.0
      %560 = vmatpush2.msra.mxu0 0.0
      %561 = vmatprep.subr.mxu0 0.0
      %562 = vmatpush2.msra.mxu0 0.0
      %563 = vmatprep.subr.mxu0 0.0
      %564 = vmatpush2.msra.mxu0 0.0
      %565 = vmatprep.subr.mxu0 0.0
      %566 = vmatpush2.msra.mxu0 0.0
      %567 = vmatprep.subr.mxu0 0.0
      %568 = vmatpush2.msra.mxu0 0.0
      %569 = vmatprep.subr.mxu0 0.0
      %570 = vmatpush2.msra.mxu0 0.0
      %571 = vmatprep.subr.mxu0 0.0
      %572 = vmatpush2.msra.mxu0 0.0
      %573 = vmatprep.subr.mxu0 0.0
      %574 = vmatpush2.msra.mxu0 0.0
      %575 = vmatprep.subr.mxu0 0.0
      %576 = vmatpush2.msra.mxu0 0.0
      %577 = vmatprep.subr.mxu0 0.0
      %578 = vmatpush2.msra.mxu0 0.0
      %579 = vmatprep.subr.mxu0 0.0
      %580 = vmatpush2.msra.mxu0 0.0
      %581 = vmatprep.subr.mxu0 0.0
      %582 = vmatpush2.msra.mxu0 0.0
      %583 = vmatprep.mubr.f32.mxu0 0.0
      %584 = vmatmul.mubr.f32.gmra.mxu0 %v191
      %v585 = vpop.f32.mrf.mxu0
      %v586 = vadd.f32 0.0, %v585
      %v587 = vpop.f32.mrf.mxu0
      %v588 = vadd.f32 0.0, %v587
      %589 = vdwg.mxu0
      %590 = vmatprep.subr.mxu0 %v287
      %591 = vmatpush1.msra.mxu0 %v286
      %592 = vmatprep.subr.mxu0 %v285
      %593 = vmatpush1.msra.mxu0 %v284
      %594 = vmatprep.subr.mxu0 %v283
      %595 = vmatpush1.msra.mxu0 %v282
      %596 = vmatprep.subr.mxu0 %v281
      %597 = vmatpush1.msra.mxu0 %v280
      %598 = vmatprep.subr.mxu0 %v279
      %599 = vmatpush1.msra.mxu0 %v278
      %600 = vmatprep.subr.mxu0 %v277
      %601 = vmatpush1.msra.mxu0 %v276
      %602 = vmatprep.subr.mxu0 %v275
      %603 = vmatpush1.msra.mxu0 %v274
      %604 = vmatprep.subr.mxu0 %v273
      %605 = vmatpush1.msra.mxu0 %v272
      %606 = vmatprep.subr.mxu0 %v271
      %607 = vmatpush1.msra.mxu0 %v270
      %608 = vmatprep.subr.mxu0 %v269
      %609 = vmatpush1.msra.mxu0 %v268
      %610 = vmatprep.subr.mxu0 %v267
      %611 = vmatpush1.msra.mxu0 %v266
      %612 = vmatprep.subr.mxu0 %v265
      %613 = vmatpush1.msra.mxu0 %v264
      %614 = vmatprep.subr.mxu0 %v263
      %615 = vmatpush1.msra.mxu0 %v262
      %616 = vmatprep.subr.mxu0 %v261
      %617 = vmatpush1.msra.mxu0 %v260
      %618 = vmatprep.subr.mxu0 %v259
      %619 = vmatpush1.msra.mxu0 %v258
      %620 = vmatprep.subr.mxu0 %v257
      %621 = vmatpush1.msra.mxu0 %v256
      %622 = vmatprep.subr.mxu0 0.0
      %623 = vmatpush2.msra.mxu0 0.0
      %624 = vmatprep.subr.mxu0 0.0
      %625 = vmatpush2.msra.mxu0 0.0
      %626 = vmatprep.subr.mxu0 0.0
      %627 = vmatpush2.msra.mxu0 0.0
      %628 = vmatprep.subr.mxu0 0.0
      %629 = vmatpush2.msra.mxu0 0.0
      %630 = vmatprep.subr.mxu0 0.0
      %631 = vmatpush2.msra.mxu0 0.0
      %632 = vmatprep.subr.mxu0 0.0
      %633 = vmatpush2.msra.mxu0 0.0
      %634 = vmatprep.subr.mxu0 0.0
      %635 = vmatpush2.msra.mxu0 0.0
      %636 = vmatprep.subr.mxu0 0.0
      %637 = vmatpush2.msra.mxu0 0.0
      %638 = vmatprep.subr.mxu0 0.0
      %639 = vmatpush2.msra.mxu0 0.0
      %640 = vmatprep.subr.mxu0 0.0
      %641 = vmatpush2.msra.mxu0 0.0
      %642 = vmatprep.subr.mxu0 0.0
      %643 = vmatpush2.msra.mxu0 0.0
      %644 = vmatprep.subr.mxu0 0.0
      %645 = vmatpush2.msra.mxu0 0.0
      %646 = vmatprep.subr.mxu0 0.0
      %647 = vmatpush2.msra.mxu0 0.0
      %648 = vmatprep.subr.mxu0 0.0
      %649 = vmatpush2.msra.mxu0 0.0
      %650 = vmatprep.subr.mxu0 0.0
      %651 = vmatpush2.msra.mxu0 0.0
      %652 = vmatprep.subr.mxu0 0.0
      %653 = vmatpush2.msra.mxu0 0.0
      %654 = vmatprep.mubr.f32.mxu0 0.0
      %655 = vmatmul.mubr.f32.gmra.mxu0 %v191
      %v656 = vpop.f32.mrf.mxu0
      %v657 = vadd.f32 0.0, %v656
      %v658 = vpop.f32.mrf.mxu0
      %v659 = vadd.f32 0.0, %v658
      %660 = vdwg.mxu0
      %661 = vmatprep.subr.mxu0 %v319
      %662 = vmatpush1.msra.mxu0 %v318
      %663 = vmatprep.subr.mxu0 %v317
      %664 = vmatpush1.msra.mxu0 %v316
      %665 = vmatprep.subr.mxu0 %v315
      %666 = vmatpush1.msra.mxu0 %v314
      %667 = vmatprep.subr.mxu0 %v313
      %668 = vmatpush1.msra.mxu0 %v312
      %669 = vmatprep.subr.mxu0 %v311
      %670 = vmatpush1.msra.mxu0 %v310
      %671 = vmatprep.subr.mxu0 %v309
      %672 = vmatpush1.msra.mxu0 %v308
      %673 = vmatprep.subr.mxu0 %v307
      %674 = vmatpush1.msra.mxu0 %v306
      %675 = vmatprep.subr.mxu0 %v305
      %676 = vmatpush1.msra.mxu0 %v304
      %677 = vmatprep.subr.mxu0 %v303
      %678 = vmatpush1.msra.mxu0 %v302
      %679 = vmatprep.subr.mxu0 %v301
      %680 = vmatpush1.msra.mxu0 %v300
      %681 = vmatprep.subr.mxu0 %v299
      %682 = vmatpush1.msra.mxu0 %v298
      %683 = vmatprep.subr.mxu0 %v297
      %684 = vmatpush1.msra.mxu0 %v296
      %685 = vmatprep.subr.mxu0 %v295
      %686 = vmatpush1.msra.mxu0 %v294
      %687 = vmatprep.subr.mxu0 %v293
      %688 = vmatpush1.msra.mxu0 %v292
      %689 = vmatprep.subr.mxu0 %v291
      %690 = vmatpush1.msra.mxu0 %v290
      %691 = vmatprep.subr.mxu0 %v289
      %692 = vmatpush1.msra.mxu0 %v288
      %693 = vmatprep.subr.mxu0 0.0
      %694 = vmatpush2.msra.mxu0 0.0
      %695 = vmatprep.subr.mxu0 0.0
      %696 = vmatpush2.msra.mxu0 0.0
      %697 = vmatprep.subr.mxu0 0.0
      %698 = vmatpush2.msra.mxu0 0.0
      %699 = vmatprep.subr.mxu0 0.0
      %700 = vmatpush2.msra.mxu0 0.0
      %701 = vmatprep.subr.mxu0 0.0
      %702 = vmatpush2.msra.mxu0 0.0
      %703 = vmatprep.subr.mxu0 0.0
      %704 = vmatpush2.msra.mxu0 0.0
      %705 = vmatprep.subr.mxu0 0.0
      %706 = vmatpush2.msra.mxu0 0.0
      %707 = vmatprep.subr.mxu0 0.0
      %708 = vmatpush2.msra.mxu0 0.0
      %709 = vmatprep.subr.mxu0 0.0
      %710 = vmatpush2.msra.mxu0 0.0
      %711 = vmatprep.subr.mxu0 0.0
      %712 = vmatpush2.msra.mxu0 0.0
      %713 = vmatprep.subr.mxu0 0.0
      %714 = vmatpush2.msra.mxu0 0.0
      %715 = vmatprep.subr.mxu0 0.0
      %716 = vmatpush2.msra.mxu0 0.0
      %717 = vmatprep.subr.mxu0 0.0
      %718 = vmatpush2.msra.mxu0 0.0
      %719 = vmatprep.subr.mxu0 0.0
      %720 = vmatpush2.msra.mxu0 0.0
      %721 = vmatprep.subr.mxu0 0.0
      %722 = vmatpush2.msra.mxu0 0.0
      %723 = vmatprep.subr.mxu0 0.0
      %724 = vmatpush2.msra.mxu0 0.0
      %725 = vmatprep.mubr.f32.mxu0 0.0
      %726 = vmatmul.mubr.f32.gmra.mxu0 %v191
      %v727 = vpop.f32.mrf.mxu0
      %v728 = vadd.f32 0.0, %v727
      %v729 = vpop.f32.mrf.mxu0
      %v730 = vadd.f32 0.0, %v729
      %731 = vdwg.mxu0
      %732 = vmatprep.subr.mxu0 %v351
      %733 = vmatpush1.msra.mxu0 %v350
      %734 = vmatprep.subr.mxu0 %v349
      %735 = vmatpush1.msra.mxu0 %v348
      %736 = vmatprep.subr.mxu0 %v347
      %737 = vmatpush1.msra.mxu0 %v346
      %738 = vmatprep.subr.mxu0 %v345
      %739 = vmatpush1.msra.mxu0 %v344
      %740 = vmatprep.subr.mxu0 %v343
      %741 = vmatpush1.msra.mxu0 %v342
      %742 = vmatprep.subr.mxu0 %v341
      %743 = vmatpush1.msra.mxu0 %v340
      %744 = vmatprep.subr.mxu0 %v339
      %745 = vmatpush1.msra.mxu0 %v338
      %746 = vmatprep.subr.mxu0 %v337
      %747 = vmatpush1.msra.mxu0 %v336
      %748 = vmatprep.subr.mxu0 %v335
      %749 = vmatpush1.msra.mxu0 %v334
      %750 = vmatprep.subr.mxu0 %v333
      %751 = vmatpush1.msra.mxu0 %v332
      %752 = vmatprep.subr.mxu0 %v331
      %753 = vmatpush1.msra.mxu0 %v330
      %754 = vmatprep.subr.mxu0 %v329
      %755 = vmatpush1.msra.mxu0 %v328
      %756 = vmatprep.subr.mxu0 %v327
      %757 = vmatpush1.msra.mxu0 %v326
      %758 = vmatprep.subr.mxu0 %v325
      %759 = vmatpush1.msra.mxu0 %v324
      %760 = vmatprep.subr.mxu0 %v323
      %761 = vmatpush1.msra.mxu0 %v322
      %762 = vmatprep.subr.mxu0 %v321
      %763 = vmatpush1.msra.mxu0 %v320
      %764 = vmatprep.subr.mxu0 0.0
      %765 = vmatpush2.msra.mxu0 0.0
      %766 = vmatprep.subr.mxu0 0.0
      %767 = vmatpush2.msra.mxu0 0.0
      %768 = vmatprep.subr.mxu0 0.0
      %769 = vmatpush2.msra.mxu0 0.0
      %770 = vmatprep.subr.mxu0 0.0
      %771 = vmatpush2.msra.mxu0 0.0
      %772 = vmatprep.subr.mxu0 0.0
      %773 = vmatpush2.msra.mxu0 0.0
      %774 = vmatprep.subr.mxu0 0.0
      %775 = vmatpush2.msra.mxu0 0.0
      %776 = vmatprep.subr.mxu0 0.0
      %777 = vmatpush2.msra.mxu0 0.0
      %778 = vmatprep.subr.mxu0 0.0
      %779 = vmatpush2.msra.mxu0 0.0
      %780 = vmatprep.subr.mxu0 0.0
      %781 = vmatpush2.msra.mxu0 0.0
      %782 = vmatprep.subr.mxu0 0.0
      %783 = vmatpush2.msra.mxu0 0.0
      %784 = vmatprep.subr.mxu0 0.0
      %785 = vmatpush2.msra.mxu0 0.0
      %786 = vmatprep.subr.mxu0 0.0
      %787 = vmatpush2.msra.mxu0 0.0
      %788 = vmatprep.subr.mxu0 0.0
      %789 = vmatpush2.msra.mxu0 0.0
      %790 = vmatprep.subr.mxu0 0.0
      %791 = vmatpush2.msra.mxu0 0.0
      %792 = vmatprep.subr.mxu0 0.0
      %793 = vmatpush2.msra.mxu0 0.0
      %794 = vmatprep.subr.mxu0 0.0
      %795 = vmatpush2.msra.mxu0 0.0
      %796 = vmatprep.mubr.f32.mxu0 0.0
      %797 = vmatmul.mubr.f32.gmra.mxu0 %v191
      %v798 = vpop.f32.mrf.mxu0
      %v799 = vadd.f32 0.0, %v798
      %v800 = vpop.f32.mrf.mxu0
      %v801 = vadd.f32 0.0, %v800
      %802 = vdwg.mxu0
      %803 = vmatprep.subr.mxu0 %v383
      %804 = vmatpush1.msra.mxu0 %v382
      %805 = vmatprep.subr.mxu0 %v381
      %806 = vmatpush1.msra.mxu0 %v380
      %807 = vmatprep.subr.mxu0 %v379
      %808 = vmatpush1.msra.mxu0 %v378
      %809 = vmatprep.subr.mxu0 %v377
      %810 = vmatpush1.msra.mxu0 %v376
      %811 = vmatprep.subr.mxu0 %v375
      %812 = vmatpush1.msra.mxu0 %v374
      %813 = vmatprep.subr.mxu0 %v373
      %814 = vmatpush1.msra.mxu0 %v372
      %815 = vmatprep.subr.mxu0 %v371
      %816 = vmatpush1.msra.mxu0 %v370
      %817 = vmatprep.subr.mxu0 %v369
      %818 = vmatpush1.msra.mxu0 %v368
      %819 = vmatprep.subr.mxu0 %v367
      %820 = vmatpush1.msra.mxu0 %v366
      %821 = vmatprep.subr.mxu0 %v365
      %822 = vmatpush1.msra.mxu0 %v364
      %823 = vmatprep.subr.mxu0 %v363
      %824 = vmatpush1.msra.mxu0 %v362
      %825 = vmatprep.subr.mxu0 %v361
      %826 = vmatpush1.msra.mxu0 %v360
      %827 = vmatprep.subr.mxu0 %v359
      %828 = vmatpush1.msra.mxu0 %v358
      %829 = vmatprep.subr.mxu0 %v357
      %830 = vmatpush1.msra.mxu0 %v356
      %831 = vmatprep.subr.mxu0 %v355
      %832 = vmatpush1.msra.mxu0 %v354
      %833 = vmatprep.subr.mxu0 %v353
      %834 = vmatpush1.msra.mxu0 %v352
      %835 = vmatprep.subr.mxu0 0.0
      %836 = vmatpush2.msra.mxu0 0.0
      %837 = vmatprep.subr.mxu0 0.0
      %838 = vmatpush2.msra.mxu0 0.0
      %839 = vmatprep.subr.mxu0 0.0
      %840 = vmatpush2.msra.mxu0 0.0
      %841 = vmatprep.subr.mxu0 0.0
      %842 = vmatpush2.msra.mxu0 0.0
      %843 = vmatprep.subr.mxu0 0.0
      %844 = vmatpush2.msra.mxu0 0.0
      %845 = vmatprep.subr.mxu0 0.0
      %846 = vmatpush2.msra.mxu0 0.0
      %847 = vmatprep.subr.mxu0 0.0
      %848 = vmatpush2.msra.mxu0 0.0
      %849 = vmatprep.subr.mxu0 0.0
      %850 = vmatpush2.msra.mxu0 0.0
      %851 = vmatprep.subr.mxu0 0.0
      %852 = vmatpush2.msra.mxu0 0.0
      %853 = vmatprep.subr.mxu0 0.0
      %854 = vmatpush2.msra.mxu0 0.0
      %855 = vmatprep.subr.mxu0 0.0
      %856 = vmatpush2.msra.mxu0 0.0
      %857 = vmatprep.subr.mxu0 0.0
      %858 = vmatpush2.msra.mxu0 0.0
      %859 = vmatprep.subr.mxu0 0.0
      %860 = vmatpush2.msra.mxu0 0.0
      %861 = vmatprep.subr.mxu0 0.0
      %862 = vmatpush2.msra.mxu0 0.0
      %863 = vmatprep.subr.mxu0 0.0
      %864 = vmatpush2.msra.mxu0 0.0
      %865 = vmatprep.subr.mxu0 0.0
      %866 = vmatpush2.msra.mxu0 0.0
      %867 = vmatprep.mubr.f32.mxu0 0.0
      %868 = vmatmul.mubr.f32.gmra.mxu0 %v191
      %v869 = vpop.f32.mrf.mxu0
      %v870 = vadd.f32 0.0, %v869
      %v871 = vpop.f32.mrf.mxu0
      %v872 = vadd.f32 0.0, %v871
      %873 = vdwg.mxu0
      %874 = vmatprep.subr.mxu0 %v415
      %875 = vmatpush1.msra.mxu0 %v414
      %876 = vmatprep.subr.mxu0 %v413
      %877 = vmatpush1.msra.mxu0 %v412
      %878 = vmatprep.subr.mxu0 %v411
      %879 = vmatpush1.msra.mxu0 %v410
      %880 = vmatprep.subr.mxu0 %v409
      %881 = vmatpush1.msra.mxu0 %v408
      %882 = vmatprep.subr.mxu0 %v407
      %883 = vmatpush1.msra.mxu0 %v406
      %884 = vmatprep.subr.mxu0 %v405
      %885 = vmatpush1.msra.mxu0 %v404
      %886 = vmatprep.subr.mxu0 %v403
      %887 = vmatpush1.msra.mxu0 %v402
      %888 = vmatprep.subr.mxu0 %v401
      %889 = vmatpush1.msra.mxu0 %v400
      %890 = vmatprep.subr.mxu0 %v399
      %891 = vmatpush1.msra.mxu0 %v398
      %892 = vmatprep.subr.mxu0 %v397
      %893 = vmatpush1.msra.mxu0 %v396
      %894 = vmatprep.subr.mxu0 %v395
      %895 = vmatpush1.msra.mxu0 %v394
      %896 = vmatprep.subr.mxu0 %v393
      %897 = vmatpush1.msra.mxu0 %v392
      %898 = vmatprep.subr.mxu0 %v391
      %899 = vmatpush1.msra.mxu0 %v390
      %900 = vmatprep.subr.mxu0 %v389
      %901 = vmatpush1.msra.mxu0 %v388
      %902 = vmatprep.subr.mxu0 %v387
      %903 = vmatpush1.msra.mxu0 %v386
      %904 = vmatprep.subr.mxu0 %v385
      %905 = vmatpush1.msra.mxu0 %v384
      %906 = vmatprep.subr.mxu0 0.0
      %907 = vmatpush2.msra.mxu0 0.0
      %908 = vmatprep.subr.mxu0 0.0
      %909 = vmatpush2.msra.mxu0 0.0
      %910 = vmatprep.subr.mxu0 0.0
      %911 = vmatpush2.msra.mxu0 0.0
      %912 = vmatprep.subr.mxu0 0.0
      %913 = vmatpush2.msra.mxu0 0.0
      %914 = vmatprep.subr.mxu0 0.0
      %915 = vmatpush2.msra.mxu0 0.0
      %916 = vmatprep.subr.mxu0 0.0
      %917 = vmatpush2.msra.mxu0 0.0
      %918 = vmatprep.subr.mxu0 0.0
      %919 = vmatpush2.msra.mxu0 0.0
      %920 = vmatprep.subr.mxu0 0.0
      %921 = vmatpush2.msra.mxu0 0.0
      %922 = vmatprep.subr.mxu0 0.0
      %923 = vmatpush2.msra.mxu0 0.0
      %924 = vmatprep.subr.mxu0 0.0
      %925 = vmatpush2.msra.mxu0 0.0
      %926 = vmatprep.subr.mxu0 0.0
      %927 = vmatpush2.msra.mxu0 0.0
      %928 = vmatprep.subr.mxu0 0.0
      %929 = vmatpush2.msra.mxu0 0.0
      %930 = vmatprep.subr.mxu0 0.0
      %931 = vmatpush2.msra.mxu0 0.0
      %932 = vmatprep.subr.mxu0 0.0
      %933 = vmatpush2.msra.mxu0 0.0
      %934 = vmatprep.subr.mxu0 0.0
      %935 = vmatpush2.msra.mxu0 0.0
      %936 = vmatprep.subr.mxu0 0.0
      %937 = vmatpush2.msra.mxu0 0.0
      %938 = vmatprep.mubr.f32.mxu0 0.0
      %939 = vmatmul.mubr.f32.gmra.mxu0 %v191
      %v940 = vpop.f32.mrf.mxu0
      %v941 = vadd.f32 0.0, %v940
      %v942 = vpop.f32.mrf.mxu0
      %v943 = vadd.f32 0.0, %v942
      %944 = vdwg.mxu0
      %945 = vmatprep.subr.mxu0 %v447
      %946 = vmatpush1.msra.mxu0 %v446
      %947 = vmatprep.subr.mxu0 %v445
      %948 = vmatpush1.msra.mxu0 %v444
      %949 = vmatprep.subr.mxu0 %v443
      %950 = vmatpush1.msra.mxu0 %v442
      %951 = vmatprep.subr.mxu0 %v441
      %952 = vmatpush1.msra.mxu0 %v440
      %953 = vmatprep.subr.mxu0 %v439
      %954 = vmatpush1.msra.mxu0 %v438
      %955 = vmatprep.subr.mxu0 %v437
      %956 = vmatpush1.msra.mxu0 %v436
      %957 = vmatprep.subr.mxu0 %v435
      %958 = vmatpush1.msra.mxu0 %v434
      %959 = vmatprep.subr.mxu0 %v433
      %960 = vmatpush1.msra.mxu0 %v432
      %961 = vmatprep.subr.mxu0 %v431
      %962 = vmatpush1.msra.mxu0 %v430
      %963 = vmatprep.subr.mxu0 %v429
      %964 = vmatpush1.msra.mxu0 %v428
      %965 = vmatprep.subr.mxu0 %v427
      %966 = vmatpush1.msra.mxu0 %v426
      %967 = vmatprep.subr.mxu0 %v425
      %968 = vmatpush1.msra.mxu0 %v424
      %969 = vmatprep.subr.mxu0 %v423
      %970 = vmatpush1.msra.mxu0 %v422
      %971 = vmatprep.subr.mxu0 %v421
      %972 = vmatpush1.msra.mxu0 %v420
      %973 = vmatprep.subr.mxu0 %v419
      %974 = vmatpush1.msra.mxu0 %v418
      %975 = vmatprep.subr.mxu0 %v417
      %976 = vmatpush1.msra.mxu0 %v416
      %977 = vmatprep.subr.mxu0 0.0
      %978 = vmatpush2.msra.mxu0 0.0
      %979 = vmatprep.subr.mxu0 0.0
      %980 = vmatpush2.msra.mxu0 0.0
      %981 = vmatprep.subr.mxu0 0.0
      %982 = vmatpush2.msra.mxu0 0.0
      %983 = vmatprep.subr.mxu0 0.0
      %984 = vmatpush2.msra.mxu0 0.0
      %985 = vmatprep.subr.mxu0 0.0
      %986 = vmatpush2.msra.mxu0 0.0
      %987 = vmatprep.subr.mxu0 0.0
      %988 = vmatpush2.msra.mxu0 0.0
      %989 = vmatprep.subr.mxu0 0.0
      %990 = vmatpush2.msra.mxu0 0.0
      %991 = vmatprep.subr.mxu0 0.0
      %992 = vmatpush2.msra.mxu0 0.0
      %993 = vmatprep.subr.mxu0 0.0
      %994 = vmatpush2.msra.mxu0 0.0
      %995 = vmatprep.subr.mxu0 0.0
      %996 = vmatpush2.msra.mxu0 0.0
      %997 = vmatprep.subr.mxu0 0.0
      %998 = vmatpush2.msra.mxu0 0.0
      %999 = vmatprep.subr.mxu0 0.0
      %1000 = vmatpush2.msra.mxu0 0.0
      %1001 = vmatprep.subr.mxu0 0.0
      %1002 = vmatpush2.msra.mxu0 0.0
      %1003 = vmatprep.subr.mxu0 0.0
      %1004 = vmatpush2.msra.mxu0 0.0
      %1005 = vmatprep.subr.mxu0 0.0
      %1006 = vmatpush2.msra.mxu0 0.0
      %1007 = vmatprep.subr.mxu0 0.0
      %1008 = vmatpush2.msra.mxu0 0.0
      %1009 = vmatprep.mubr.f32.mxu0 0.0
      %1010 = vmatmul.mubr.f32.gmra.mxu0 %v191
      %v1011 = vpop.f32.mrf.mxu0
      %v1012 = vadd.f32 0.0, %v1011
      %v1013 = vpop.f32.mrf.mxu0
      %v1014 = vadd.f32 0.0, %v1013
      %1015 = vdwg.mxu0
      %v1016 = vrot.slane %v515, 4
      %v1017 = vmax.f32 %v515, %v1016
      %v1018 = vrot.slane %v1017, 2
      %v1019 = vmax.f32 %v1017, %v1018
      %v1020 = vrot.slane %v1019, 1
      %v1021 = vmax.f32 %v1019, %v1020
      %v1022 = vrot.slane %v517, 4
      %v1023 = vmax.f32 %v517, %v1022
      %v1024 = vrot.slane %v1023, 2
      %v1025 = vmax.f32 %v1023, %v1024
      %v1026 = vrot.slane %v1025, 1
      %v1027 = vmax.f32 %v1025, %v1026
      %v1028 = vrot.slane %v586, 4
      %v1029 = vmax.f32 %v586, %v1028
      %v1030 = vrot.slane %v1029, 2
      %v1031 = vmax.f32 %v1029, %v1030
      %v1032 = vrot.slane %v1031, 1
      %v1033 = vmax.f32 %v1031, %v1032
      %v1034 = vrot.slane %v588, 4
      %v1035 = vmax.f32 %v588, %v1034
      %v1036 = vrot.slane %v1035, 2
      %v1037 = vmax.f32 %v1035, %v1036
      %v1038 = vrot.slane %v1037, 1
      %v1039 = vmax.f32 %v1037, %v1038
      %v1040 = vrot.slane %v657, 4
      %v1041 = vmax.f32 %v657, %v1040
      %v1042 = vrot.slane %v1041, 2
      %v1043 = vmax.f32 %v1041, %v1042
      %v1044 = vrot.slane %v1043, 1
      %v1045 = vmax.f32 %v1043, %v1044
      %v1046 = vrot.slane %v659, 4
      %v1047 = vmax.f32 %v659, %v1046
      %v1048 = vrot.slane %v1047, 2
      %v1049 = vmax.f32 %v1047, %v1048
      %v1050 = vrot.slane %v1049, 1
      %v1051 = vmax.f32 %v1049, %v1050
      %v1052 = vrot.slane %v728, 4
      %v1053 = vmax.f32 %v728, %v1052
      %v1054 = vrot.slane %v1053, 2
      %v1055 = vmax.f32 %v1053, %v1054
      %v1056 = vrot.slane %v1055, 1
      %v1057 = vmax.f32 %v1055, %v1056
      %v1058 = vrot.slane %v730, 4
      %v1059 = vmax.f32 %v730, %v1058
      %v1060 = vrot.slane %v1059, 2
      %v1061 = vmax.f32 %v1059, %v1060
      %v1062 = vrot.slane %v1061, 1
      %v1063 = vmax.f32 %v1061, %v1062
      %v1064 = vrot.slane %v799, 4
      %v1065 = vmax.f32 %v799, %v1064
      %v1066 = vrot.slane %v1065, 2
      %v1067 = vmax.f32 %v1065, %v1066
      %v1068 = vrot.slane %v1067, 1
      %v1069 = vmax.f32 %v1067, %v1068
      %v1070 = vrot.slane %v801, 4
      %v1071 = vmax.f32 %v801, %v1070
      %v1072 = vrot.slane %v1071, 2
      %v1073 = vmax.f32 %v1071, %v1072
      %v1074 = vrot.slane %v1073, 1
      %v1075 = vmax.f32 %v1073, %v1074
      %v1076 = vrot.slane %v870, 4
      %v1077 = vmax.f32 %v870, %v1076
      %v1078 = vrot.slane %v1077, 2
      %v1079 = vmax.f32 %v1077, %v1078
      %v1080 = vrot.slane %v1079, 1
      %v1081 = vmax.f32 %v1079, %v1080
      %v1082 = vrot.slane %v872, 4
      %v1083 = vmax.f32 %v872, %v1082
      %v1084 = vrot.slane %v1083, 2
      %v1085 = vmax.f32 %v1083, %v1084
      %v1086 = vrot.slane %v1085, 1
      %v1087 = vmax.f32 %v1085, %v1086
      %v1088 = vrot.slane %v941, 4
      %v1089 = vmax.f32 %v941, %v1088
      %v1090 = vrot.slane %v1089, 2
      %v1091 = vmax.f32 %v1089, %v1090
      %v1092 = vrot.slane %v1091, 1
      %v1093 = vmax.f32 %v1091, %v1092
      %v1094 = vrot.slane %v943, 4
      %v1095 = vmax.f32 %v943, %v1094
      %v1096 = vrot.slane %v1095, 2
      %v1097 = vmax.f32 %v1095, %v1096
      %v1098 = vrot.slane %v1097, 1
      %v1099 = vmax.f32 %v1097, %v1098
      %v1100 = vrot.slane %v1012, 4
      %v1101 = vmax.f32 %v1012, %v1100
      %v1102 = vrot.slane %v1101, 2
      %v1103 = vmax.f32 %v1101, %v1102
      %v1104 = vrot.slane %v1103, 1
      %v1105 = vmax.f32 %v1103, %v1104
      %v1106 = vrot.slane %v1014, 4
      %v1107 = vmax.f32 %v1014, %v1106
      %v1108 = vrot.slane %v1107, 2
      %v1109 = vmax.f32 %v1107, %v1108
      %v1110 = vrot.slane %v1109, 1
      %v1111 = vmax.f32 %v1109, %v1110
      %v1112 = vsub.f32 %v515, %v1021
      %v1113 = vsub.f32 %v517, %v1027
      %v1114 = vsub.f32 %v586, %v1033
      %v1115 = vsub.f32 %v588, %v1039
      %v1116 = vsub.f32 %v657, %v1045
      %v1117 = vsub.f32 %v659, %v1051
      %v1118 = vsub.f32 %v728, %v1057
      %v1119 = vsub.f32 %v730, %v1063
      %v1120 = vsub.f32 %v799, %v1069
      %v1121 = vsub.f32 %v801, %v1075
      %v1122 = vsub.f32 %v870, %v1081
      %v1123 = vsub.f32 %v872, %v1087
      %v1124 = vsub.f32 %v941, %v1093
      %v1125 = vsub.f32 %v943, %v1099
      %v1126 = vsub.f32 %v1012, %v1105
      %v1127 = vsub.f32 %v1014, %v1111
      %v1128 = vmul.f32 %v1112, 1.442695
      %v1129 = vpow.pop %v1128
      %v1130 = vmul.f32 %v1113, 1.442695
      %v1131 = vpow.pop %v1130
      %v1132 = vmul.f32 %v1114, 1.442695
      %v1133 = vpow.pop %v1132
      %v1134 = vmul.f32 %v1115, 1.442695
      %v1135 = vpow.pop %v1134
      %v1136 = vmul.f32 %v1116, 1.442695
      %v1137 = vpow.pop %v1136
      %v1138 = vmul.f32 %v1117, 1.442695
      %v1139 = vpow.pop %v1138
      %v1140 = vmul.f32 %v1118, 1.442695
      %v1141 = vpow.pop %v1140
      %v1142 = vmul.f32 %v1119, 1.442695
      %v1143 = vpow.pop %v1142
      %v1144 = vmul.f32 %v1120, 1.442695
      %v1145 = vpow.pop %v1144
      %v1146 = vmul.f32 %v1121, 1.442695
      %v1147 = vpow.pop %v1146
      %v1148 = vmul.f32 %v1122, 1.442695
      %v1149 = vpow.pop %v1148
      %v1150 = vmul.f32 %v1123, 1.442695
      %v1151 = vpow.pop %v1150
      %v1152 = vmul.f32 %v1124, 1.442695
      %v1153 = vpow.pop %v1152
      %v1154 = vmul.f32 %v1125, 1.442695
      %v1155 = vpow.pop %v1154
      %v1156 = vmul.f32 %v1126, 1.442695
      %v1157 = vpow.pop %v1156
      %v1158 = vmul.f32 %v1127, 1.442695
      %v1159 = vpow.pop %v1158
      %v1160 = vrot.slane %v1129, 4
      %v1161 = vadd.f32 %v1129, %v1160
      %v1162 = vrot.slane %v1161, 2
      %v1163 = vadd.f32 %v1161, %v1162
      %v1164 = vrot.slane %v1163, 1
      %v1165 = vadd.f32 %v1163, %v1164
      %v1166 = vrot.slane %v1131, 4
      %v1167 = vadd.f32 %v1131, %v1166
      %v1168 = vrot.slane %v1167, 2
      %v1169 = vadd.f32 %v1167, %v1168
      %v1170 = vrot.slane %v1169, 1
      %v1171 = vadd.f32 %v1169, %v1170
      %v1172 = vrot.slane %v1133, 4
      %v1173 = vadd.f32 %v1133, %v1172
      %v1174 = vrot.slane %v1173, 2
      %v1175 = vadd.f32 %v1173, %v1174
      %v1176 = vrot.slane %v1175, 1
      %v1177 = vadd.f32 %v1175, %v1176
      %v1178 = vrot.slane %v1135, 4
      %v1179 = vadd.f32 %v1135, %v1178
      %v1180 = vrot.slane %v1179, 2
      %v1181 = vadd.f32 %v1179, %v1180
      %v1182 = vrot.slane %v1181, 1
      %v1183 = vadd.f32 %v1181, %v1182
      %v1184 = vrot.slane %v1137, 4
      %v1185 = vadd.f32 %v1137, %v1184
      %v1186 = vrot.slane %v1185, 2
      %v1187 = vadd.f32 %v1185, %v1186
      %v1188 = vrot.slane %v1187, 1
      %v1189 = vadd.f32 %v1187, %v1188
      %v1190 = vrot.slane %v1139, 4
      %v1191 = vadd.f32 %v1139, %v1190
      %v1192 = vrot.slane %v1191, 2
      %v1193 = vadd.f32 %v1191, %v1192
      %v1194 = vrot.slane %v1193, 1
      %v1195 = vadd.f32 %v1193, %v1194
      %v1196 = vrot.slane %v1141, 4
      %v1197 = vadd.f32 %v1141, %v1196
      %v1198 = vrot.slane %v1197, 2
      %v1199 = vadd.f32 %v1197, %v1198
      %v1200 = vrot.slane %v1199, 1
      %v1201 = vadd.f32 %v1199, %v1200
      %v1202 = vrot.slane %v1143, 4
      %v1203 = vadd.f32 %v1143, %v1202
      %v1204 = vrot.slane %v1203, 2
      %v1205 = vadd.f32 %v1203, %v1204
      %v1206 = vrot.slane %v1205, 1
      %v1207 = vadd.f32 %v1205, %v1206
      %v1208 = vrot.slane %v1145, 4
      %v1209 = vadd.f32 %v1145, %v1208
      %v1210 = vrot.slane %v1209, 2
      %v1211 = vadd.f32 %v1209, %v1210
      %v1212 = vrot.slane %v1211, 1
      %v1213 = vadd.f32 %v1211, %v1212
      %v1214 = vrot.slane %v1147, 4
      %v1215 = vadd.f32 %v1147, %v1214
      %v1216 = vrot.slane %v1215, 2
      %v1217 = vadd.f32 %v1215, %v1216
      %v1218 = vrot.slane %v1217, 1
      %v1219 = vadd.f32 %v1217, %v1218
      %v1220 = vrot.slane %v1149, 4
      %v1221 = vadd.f32 %v1149, %v1220
      %v1222 = vrot.slane %v1221, 2
      %v1223 = vadd.f32 %v1221, %v1222
      %v1224 = vrot.slane %v1223, 1
      %v1225 = vadd.f32 %v1223, %v1224
      %v1226 = vrot.slane %v1151, 4
      %v1227 = vadd.f32 %v1151, %v1226
      %v1228 = vrot.slane %v1227, 2
      %v1229 = vadd.f32 %v1227, %v1228
      %v1230 = vrot.slane %v1229, 1
      %v1231 = vadd.f32 %v1229, %v1230
      %v1232 = vrot.slane %v1153, 4
      %v1233 = vadd.f32 %v1153, %v1232
      %v1234 = vrot.slane %v1233, 2
      %v1235 = vadd.f32 %v1233, %v1234
      %v1236 = vrot.slane %v1235, 1
      %v1237 = vadd.f32 %v1235, %v1236
      %v1238 = vrot.slane %v1155, 4
      %v1239 = vadd.f32 %v1155, %v1238
      %v1240 = vrot.slane %v1239, 2
      %v1241 = vadd.f32 %v1239, %v1240
      %v1242 = vrot.slane %v1241, 1
      %v1243 = vadd.f32 %v1241, %v1242
      %v1244 = vrot.slane %v1157, 4
      %v1245 = vadd.f32 %v1157, %v1244
      %v1246 = vrot.slane %v1245, 2
      %v1247 = vadd.f32 %v1245, %v1246
      %v1248 = vrot.slane %v1247, 1
      %v1249 = vadd.f32 %v1247, %v1248
      %v1250 = vrot.slane %v1159, 4
      %v1251 = vadd.f32 %v1159, %v1250
      %v1252 = vrot.slane %v1251, 2
      %v1253 = vadd.f32 %v1251, %v1252
      %v1254 = vrot.slane %v1253, 1
      %v1255 = vadd.f32 %v1253, %v1254
      %v1256 = vrcp.pop %v1165
      %v1257 = vrcp.pop %v1171
      %v1258 = vrcp.pop %v1177
      %v1259 = vrcp.pop %v1183
      %v1260 = vrcp.pop %v1189
      %v1261 = vrcp.pop %v1195
      %v1262 = vrcp.pop %v1201
      %v1263 = vrcp.pop %v1207
      %v1264 = vrcp.pop %v1213
      %v1265 = vrcp.pop %v1219
      %v1266 = vrcp.pop %v1225
      %v1267 = vrcp.pop %v1231
      %v1268 = vrcp.pop %v1237
      %v1269 = vrcp.pop %v1243
      %v1270 = vrcp.pop %v1249
      %v1271 = vrcp.pop %v1255
      %v1272 = vmul.f32 %v1129, %v1256
      %v1273 = vmul.f32 %v1131, %v1257
      %v1274 = vmul.f32 %v1133, %v1258
      %v1275 = vmul.f32 %v1135, %v1259
      %v1276 = vmul.f32 %v1137, %v1260
      %v1277 = vmul.f32 %v1139, %v1261
      %v1278 = vmul.f32 %v1141, %v1262
      %v1279 = vmul.f32 %v1143, %v1263
      %v1280 = vmul.f32 %v1145, %v1264
      %v1281 = vmul.f32 %v1147, %v1265
      %v1282 = vmul.f32 %v1149, %v1266
      %v1283 = vmul.f32 %v1151, %v1267
      %v1284 = vmul.f32 %v1153, %v1268
      %v1285 = vmul.f32 %v1155, %v1269
      %v1286 = vmul.f32 %v1157, %v1270
      %v1287 = vmul.f32 %v1159, %v1271
      %1288 = vst [vmem:[%s188] sm:$0xff] %v1272
      %1289 = vst [vmem:[%s188 + $0x8] sm:$0xff] %v1273
      %1290 = vst [vmem:[%s188 + $0x10] sm:$0xff] %v1274
      %1291 = vst [vmem:[%s188 + $0x18] sm:$0xff] %v1275
      %1292 = vst [vmem:[%s188 + $0x20] sm:$0xff] %v1276
      %1293 = vst [vmem:[%s188 + $0x28] sm:$0xff] %v1277
      %1294 = vst [vmem:[%s188 + $0x30] sm:$0xff] %v1278
      %1295 = vst [vmem:[%s188 + $0x38] sm:$0xff] %v1279
      %1296 = vst [vmem:[%s188 + $0x40] sm:$0xff] %v1280
      %1297 = vst [vmem:[%s188 + $0x48] sm:$0xff] %v1281
      %1298 = vst [vmem:[%s188 + $0x50] sm:$0xff] %v1282
      %1299 = vst [vmem:[%s188 + $0x58] sm:$0xff] %v1283
      %1300 = vst [vmem:[%s188 + $0x60] sm:$0xff] %v1284
      %1301 = vst [vmem:[%s188 + $0x68] sm:$0xff] %v1285
      %1302 = vst [vmem:[%s188 + $0x70] sm:$0xff] %v1286
      %1303 = vst [vmem:[%s188 + $0x78] sm:$0xff] %v1287
      %s1304 = smul.u32 8, %s17
      %s1305 = smul.u32 2, %s18
      %p1306 = scmp.lt.s32.totalorder %s1304, 15
      %s1307 = scalar_select %p1306, %s1304, 15
      %p1308 = scmp.lt.s32.totalorder %s1305, 1
      %s1309 = scalar_select %p1308, %s1305, 1
      %s1310 = smul.addr %s1307, 2
      %s1311 = sadd.s32 %s1309, %s1310
      %s1312 = smul.addr %s1311, 8
      %s1313 = scalar_lea.vmem %s2, %s1312
      // Predicated region
      $region29: #{_forward.1} parent=27 // pred_check
        %p1314 = pneg %p94
      $region30: #{_forward.1} parent=27 // pred_check_branch
        %1316 = sbr.rel (%p1314) target = $region32
      $region31: #{_forward.1} parent=27 // pred_region
        %s1317 = smul.u32 8, %s17
        %s1318 = smul.u32 2, %s18
      $region32: #{_forward.1} parent=27 // pred_fallthru
        _
    $region28: #{_forward.1} parent=5 // pred_fallthru
      _
    %p1319 = scmp.le.s32.totalorder 2, %s8
    // Predicated region
    $region33: #{_forward.1} parent=5 // pred_check
      %p1320 = pneg %p1319
    $region34: #{_forward.1} parent=5 // pred_check_branch
      %1322 = sbr.rel (%p1320) target = $region36
    $region35: #{_forward.1} parent=5 // pred_region
      %s1323 = ssub.s32 %s8, 2
      // Predicated region
      $region37: #{_forward.1} parent=35 // pred_check
        %p1324 = pneg %p100
      $region38: #{_forward.1} parent=35 // pred_check_branch
        %1326 = sbr.rel (%p1324) target = $region40
      $region39: #{_forward.1} parent=35 // pred_region
        %s1327 = smul.u32 8, %s19
        %s1328 = smul.u32 2, %s20
        %p1329 = scmp.lt.s32.totalorder %s1327, 15
        %s1330 = scalar_select %p1329, %s1327, 15
        %p1331 = scmp.lt.s32.totalorder %s1328, 1
        %s1332 = scalar_select %p1331, %s1328, 1
        %s1333 = smul.addr %s1330, 2
        %s1334 = sadd.s32 %s1332, %s1333
        %s1335 = smul.addr %s1334, 8
        %s1336 = scalar_lea.vmem %s2, %s1335
      $region40: #{_forward.1} parent=35 // pred_fallthru
        _
    $region36: #{_forward.1} parent=5 // pred_fallthru
      _
  $region6: #{_forward.1} parent=0 // loop_footer
    %s12 = sadd.s32 1, %s8
  $region7: #{_forward.1} parent=0 // loop_footer_branch
    %7 = sbr.rel target = $region3
  $region8: #{_forward.1} parent=0 // loop_exit
    _

</llo_original>
